<compile_context>
chip_gen: v5e
topology: v5e:2x2
jax: 0.10.0
libtpu: 0.0.40
codegen_flags: <defaults>
</compile_context>

<pallas_src>
import jax
import jax.numpy as jnp
from jax.experimental import pallas as pl
from jax.experimental.pallas import tpu as pltpu


def _round_up(x, m):
    return ((x + m - 1) // m) * m


# ----------------------------------------------------------------------------
# Fused kernel: softmax (once per batch tile) + packed matmul + clamp/exp
# ----------------------------------------------------------------------------
def _etm_decoder_kernel(zz_ref, beta_ref, lmbda_ref, theta_ref, alpha_ref,
                        theta_sc):
    n = pl.program_id(1)

    # Softmax once per batch tile (n == 0 is the first, innermost-axis step
    # for every batch tile); keep it resident in VMEM scratch for later N
    # tiles and emit theta only once.
    @pl.when(n == 0)
    def _():
        zz = zz_ref[...].astype(jnp.float32)
        m = jnp.max(zz, axis=-1, keepdims=True)
        e = jnp.exp(zz - m)
        th = e / jnp.sum(e, axis=-1, keepdims=True)
        theta_sc[...] = th
        theta_ref[...] = th.astype(theta_ref.dtype)

    theta = theta_sc[...]

    # Single packed MXU matmul covering both towers (f32 accumulate).
    s = jnp.dot(theta.astype(beta_ref.dtype), beta_ref[...],
                preferred_element_type=jnp.float32)

    # lmbda folded into the exponent: exp(lmbda) * exp(clip(s)) == exp(clip(s)+lmbda)
    alpha_ref[...] = jnp.exp(
        jnp.clip(s, -10.0, 10.0) + lmbda_ref[...]).astype(alpha_ref.dtype)


# ----------------------------------------------------------------------------
# Wrapper
# ----------------------------------------------------------------------------
def etm_decoder_forward(zz,
                        p_beta_l_mean, p_beta_l_lnvar, p_beta_l_bias,
                        p_beta_r_mean, p_beta_r_lnvar, p_beta_r_bias,
                        lmbda_l, lmbda_r,
                        eps_l, eps_r,
                        *, batch_block=None, n_block=None,
                        mxu_dtype=jnp.float32, alpha_dtype=jnp.float32):
    """Fused ETMDecoder.forward. Returns the same 7-tuple as the torch module."""
    batch, latent = zz.shape
    out1 = p_beta_l_mean.shape[1]
    out2 = p_beta_r_mean.shape[1]

    # --- host-side beta precompute (hoisted out of the kernel; XLA fuses) ----
    lv_l = jnp.clip(p_beta_l_lnvar, -5.0, 5.0)
    lv_r = jnp.clip(p_beta_r_lnvar, -5.0, 5.0)
    beta_l = p_beta_l_mean + eps_l * jnp.exp(0.5 * lv_l) + p_beta_l_bias
    beta_r = p_beta_r_mean + eps_r * jnp.exp(0.5 * lv_r) + p_beta_r_bias

    # --- lane-aligned packing of both towers --------------------------------
    o1p = _round_up(out1, 128)
    o2p = _round_up(out2, 128)
    out_p = o1p + o2p

    # N (lane) tile size.
    if n_block is None:
        tn = min(out_p, 4096)
    else:
        tn = max(128, min(_round_up(n_block, 128), out_p))
    out_p = _round_up(out_p, tn)
    n_tiles = out_p // tn

    # Batch tile.
    if batch_block is None:
        tb = batch if batch <= 256 else 256
    else:
        tb = min(batch_block, batch)
    if tb != batch:
        tb = max(8, (tb // 8) * 8)   # sub-full second-minor block dim: 8-aligned
    n_bt = pl.cdiv(batch, tb)

    beta = jnp.zeros((latent, out_p), jnp.float32)
    beta = beta.at[:, :out1].set(beta_l)
    beta = beta.at[:, o1p:o1p + out2].set(beta_r)
    beta = beta.astype(mxu_dtype)

    lam = jnp.zeros((1, out_p), jnp.float32)
    lam = lam.at[:, :out1].set(jnp.reshape(lmbda_l, ()))
    lam = lam.at[:, o1p:o1p + out2].set(jnp.reshape(lmbda_r, ()))

    # --- VMEM budget (with headroom; capped for v7x's 64 MiB) ---------------
    beta_bufs = 1 if n_tiles == 1 else 2
    isz = lambda dt: jnp.dtype(dt).itemsize
    vmem_bytes = (2 * tb * latent * 4                       # zz (double buffered)
                  + beta_bufs * latent * tn * isz(mxu_dtype)
                  + beta_bufs * 8 * tn * 4                  # lmbda row (sublane pad)
                  + 2 * tb * latent * 4                     # theta out
                  + 2 * tb * tn * isz(alpha_dtype)          # alpha out
                  + tb * latent * 4)                        # theta scratch
    vmem_limit = int(min(max(int(vmem_bytes * 1.4), 32 << 20), 64 << 20))

    # --- BlockSpecs ----------------------------------------------------------
    zz_spec = pl.BlockSpec((tb, latent), lambda i, n: (i, 0))
    theta_spec = pl.BlockSpec((tb, latent), lambda i, n: (i, 0))
    alpha_spec = pl.BlockSpec((tb, tn), lambda i, n: (i, n))
    if n_tiles == 1:
        # Block index never changes -> single buffer halves parameter VMEM.
        beta_spec = pl.BlockSpec((latent, tn), lambda i, n: (0, n),
                                 pipeline_mode=pl.Buffered(1))
        lam_spec = pl.BlockSpec((1, tn), lambda i, n: (0, n),
                                pipeline_mode=pl.Buffered(1))
    else:
        beta_spec = pl.BlockSpec((latent, tn), lambda i, n: (0, n))
        lam_spec = pl.BlockSpec((1, tn), lambda i, n: (0, n))

    theta, alpha = pl.pallas_call(
        _etm_decoder_kernel,
        out_shape=(jax.ShapeDtypeStruct((batch, latent), jnp.float32),
                   jax.ShapeDtypeStruct((batch, out_p), alpha_dtype)),
        grid_spec=pltpu.PrefetchScalarGridSpec(
            num_scalar_prefetch=0,
            grid=(n_bt, n_tiles),
            in_specs=[zz_spec, beta_spec, lam_spec],
            out_specs=(theta_spec, alpha_spec),
            scratch_shapes=[pltpu.VMEM((tb, latent), jnp.float32)]),
        compiler_params=pltpu.CompilerParams(
            dimension_semantics=("parallel", "arbitrary"),
            vmem_limit_bytes=vmem_limit),
    )(zz, beta, lam)

    # Splits land on 128-lane boundaries (0 and o1p) -> cheap slices.
    alpha_l = alpha[:, :out1]
    alpha_r = alpha[:, o1p:o1p + out2]

    # First four returns are raw parameters (pass-through, no compute needed).
    return (p_beta_l_mean, p_beta_l_lnvar, p_beta_r_mean, p_beta_r_lnvar,
            theta, alpha_l, alpha_r)


# ----------------------------------------------------------------------------
# Demo / correctness check
# ----------------------------------------------------------------------------
def _make_inputs(key, batch, latent, out1, out2, jitter=0.1):
    ks = jax.random.split(key, 9)
    zz = jax.random.normal(ks[0], (batch, latent), jnp.float32)
    p_beta_l_mean = jitter * jax.random.normal(ks[1], (latent, out1), jnp.float32)
    p_beta_r_mean = jitter * jax.random.normal(ks[2], (latent, out2), jnp.float32)
    p_beta_l_lnvar = jnp.zeros((latent, out1), jnp.float32)
    p_beta_r_lnvar = jnp.zeros((latent, out2), jnp.float32)
    p_beta_l_bias = jitter * jax.random.normal(ks[3], (1, out1), jnp.float32)
    p_beta_r_bias = jitter * jax.random.normal(ks[4], (1, out2), jnp.float32)
    lmbda_l = jitter * jax.random.normal(ks[5], (1,), jnp.float32)
    lmbda_r = jitter * jax.random.normal(ks[6], (1,), jnp.float32)
    # Deterministic reparameterization noise supplied from host.
    eps_l = jax.random.normal(ks[7], (latent, out1), jnp.float32)
    eps_r = jax.random.normal(ks[8], (latent, out2), jnp.float32)
    return (zz, p_beta_l_mean, p_beta_l_lnvar, p_beta_l_bias,
            p_beta_r_mean, p_beta_r_lnvar, p_beta_r_bias,
            lmbda_l, lmbda_r, eps_l, eps_r)


def _ref_forward(zz, ml, lvl, bl, mr, lvr, br, ll, lr, el, er):
    m = jnp.max(zz, axis=-1, keepdims=True)
    e = jnp.exp(zz - m)
    th = e / jnp.sum(e, axis=-1, keepdims=True)
    cl = jnp.clip(lvl, -5.0, 5.0)
    cr = jnp.clip(lvr, -5.0, 5.0)
    beta_l = ml + el * jnp.exp(0.5 * cl) + bl
    beta_r = mr + er * jnp.exp(0.5 * cr) + br
    dot = lambda a, b: jnp.dot(a, b, precision=jax.lax.Precision.HIGHEST)
    a_l = jnp.exp(ll) * jnp.exp(jnp.clip(dot(th, beta_l), -10.0, 10.0))
    a_r = jnp.exp(lr) * jnp.exp(jnp.clip(dot(th, beta_r), -10.0, 10.0))
    return th, a_l, a_r


if __name__ == "__main__":
    root = jax.random.PRNGKey(0)
    k1, k2 = jax.random.split(root)

    # ---- test 1: small shapes, f32 MXU path, tight tolerance ----------------
    args1 = _make_inputs(k1, batch=8, latent=16, out1=32, out2=24)
    (zz, ml, lvl, bl, mr, lvr, br, ll, lr, el, er) = args1
    outs = etm_decoder_forward(zz, ml, lvl, bl, mr, lvr, br, ll, lr, el, er)
    jax.block_until_ready(outs)
    (r_ml, r_lvl, r_mr, r_lvr, theta, alpha_l, alpha_r) = outs
    rt, ral, rar = _ref_forward(zz, ml, lvl, bl, mr, lvr, br, ll, lr, el, er)
    assert jnp.allclose(theta, rt, atol=1e-4, rtol=1e-4), "theta mismatch (f32)"
    assert jnp.allclose(alpha_l, ral, atol=1e-4, rtol=1e-4), "alpha_l mismatch (f32)"
    assert jnp.allclose(alpha_r, rar, atol=1e-4, rtol=1e-4), "alpha_r mismatch (f32)"
    assert r_ml is ml and r_lvl is lvl and r_mr is mr and r_lvr is lvr

    # ---- test 2: multi-tile grid (batch + N tiling), bf16 MXU operands ------
    args2 = _make_inputs(k2, batch=48, latent=16, out1=200, out2=150)
    (zz, ml, lvl, bl, mr, lvr, br, ll, lr, el, er) = args2
    outs = etm_decoder_forward(zz, ml, lvl, bl, mr, lvr, br, ll, lr, el, er,
                               batch_block=16, n_block=128,
                               mxu_dtype=jnp.bfloat16)
    jax.block_until_ready(outs)
    (_, _, _, _, theta, alpha_l, alpha_r) = outs
    rt, ral, rar = _ref_forward(zz, ml, lvl, bl, mr, lvr, br, ll, lr, el, er)
    assert jnp.allclose(theta, rt, atol=1e-4, rtol=1e-4), "theta mismatch (tiled)"
    assert jnp.allclose(alpha_l, ral, atol=3e-2, rtol=3e-2), "alpha_l mismatch (bf16)"
    assert jnp.allclose(alpha_r, rar, atol=3e-2, rtol=3e-2), "alpha_r mismatch (bf16)"

    print("KERNEL_OK")
</pallas_src>

<mosaic_0001>
module attributes {stable_mosaic.version = 11 : i64} {
  func.func @_etm_decoder_kernel(%arg0: i32, %arg1: i32, %arg2: memref<8x16xf32, #tpu.memory_space<vmem>>, %arg3: memref<16x256xf32, #tpu.memory_space<vmem>>, %arg4: memref<1x256xf32, #tpu.memory_space<vmem>>, %arg5: memref<8x16xf32, #tpu.memory_space<vmem>>, %arg6: memref<8x256xf32, #tpu.memory_space<vmem>>, %arg7: memref<8x16xf32, #tpu.memory_space<vmem>>) attributes {dimension_semantics = [#tpu.dimension_semantics<parallel>, #tpu.dimension_semantics<arbitrary>], iteration_bounds = array<i64: 1, 1>, scalar_prefetch = 0 : i64, scratch_operands = 1 : i64, tpu.core_type = #tpu.core_type<tc>, window_params = [{transform_indices = @transform_0, window_bounds = array<i64: 8, 16>}, {pipeline_mode = #tpu.pipeline_mode<synchronous>, transform_indices = @transform_1, window_bounds = array<i64: 16, 256>}, {pipeline_mode = #tpu.pipeline_mode<synchronous>, transform_indices = @transform_2, window_bounds = array<i64: 1, 256>}, {transform_indices = @transform_3, window_bounds = array<i64: 8, 16>}, {transform_indices = @transform_4, window_bounds = array<i64: 8, 256>}]} {
    %c0_i32 = arith.constant 0 : i32
    %0 = arith.cmpi eq, %arg1, %c0_i32 : i32
    %1 = arith.extui %0 : i1 to i32
    %c0_i32_0 = arith.constant 0 : i32
    %2 = arith.cmpi ne, %1, %c0_i32_0 : i32
    scf.if %2 {
      %c0_10 = arith.constant 0 : index
      %c0_11 = arith.constant 0 : index
      %15 = vector.load %arg2[%c0_10, %c0_11] : memref<8x16xf32, #tpu.memory_space<vmem>>, vector<8x16xf32>
      %cst_12 = arith.constant dense<0xFF800000> : vector<8xf32>
      %16 = vector.multi_reduction <maximumf>, %15, %cst_12 [1] : vector<8x16xf32> to vector<8xf32>
      %17 = vector.shape_cast %16 : vector<8xf32> to vector<8x1xf32>
      %18 = vector.broadcast %17 : vector<8x1xf32> to vector<8x16xf32>
      %19 = arith.subf %15, %18 : vector<8x16xf32>
      %20 = math.exp %19 : vector<8x16xf32>
      %cst_13 = arith.constant dense<0.000000e+00> : vector<8xf32>
      %21 = vector.multi_reduction <add>, %20, %cst_13 [1] : vector<8x16xf32> to vector<8xf32>
      %22 = vector.shape_cast %21 : vector<8xf32> to vector<8x1xf32>
      %23 = vector.broadcast %22 : vector<8x1xf32> to vector<8x16xf32>
      %24 = arith.divf %20, %23 : vector<8x16xf32>
      %c0_14 = arith.constant 0 : index
      %c0_15 = arith.constant 0 : index
      %25 = vector.load %arg7[%c0_14, %c0_15] : memref<8x16xf32, #tpu.memory_space<vmem>>, vector<8x16xf32>
      tpu.vector_store %arg7[%c0_14, %c0_15], %24 {strides = array<i32>} : memref<8x16xf32, #tpu.memory_space<vmem>>, vector<8x16xf32>,
      %c0_16 = arith.constant 0 : index
      %c0_17 = arith.constant 0 : index
      %26 = vector.load %arg5[%c0_16, %c0_17] : memref<8x16xf32, #tpu.memory_space<vmem>>, vector<8x16xf32>
      tpu.vector_store %arg5[%c0_16, %c0_17], %24 {strides = array<i32>} : memref<8x16xf32, #tpu.memory_space<vmem>>, vector<8x16xf32>,
    } else {
    }
    %c0 = arith.constant 0 : index
    %c0_1 = arith.constant 0 : index
    %3 = vector.load %arg7[%c0, %c0_1] : memref<8x16xf32, #tpu.memory_space<vmem>>, vector<8x16xf32>
    %c0_2 = arith.constant 0 : index
    %c0_3 = arith.constant 0 : index
    %4 = vector.load %arg3[%c0_2, %c0_3] : memref<16x256xf32, #tpu.memory_space<vmem>>, vector<16x256xf32>
    %cst = arith.constant dense<0.000000e+00> : vector<8x256xf32>
    %5 = tpu.matmul %3, %4, %cst {dimension_numbers = #tpu.dot_dimension_numbers<[1], [0], [0], [1], [0, 0, 1, 1], [], []>} : vector<8x16xf32>, vector<16x256xf32>, vector<8x256xf32> -> vector<8x256xf32>
    %cst_4 = arith.constant -1.000000e+01 : f32
    %cst_5 = arith.constant 1.000000e+01 : f32
    %6 = vector.broadcast %cst_4 : f32 to vector<8x256xf32>
    %7 = arith.maximumf %6, %5 : vector<8x256xf32>
    %8 = vector.broadcast %cst_5 : f32 to vector<8x256xf32>
    %9 = arith.minimumf %8, %7 : vector<8x256xf32>
    %c0_6 = arith.constant 0 : index
    %c0_7 = arith.constant 0 : index
    %10 = vector.load %arg4[%c0_6, %c0_7] : memref<1x256xf32, #tpu.memory_space<vmem>>, vector<1x256xf32>
    %11 = vector.broadcast %10 : vector<1x256xf32> to vector<8x256xf32>
    %12 = arith.addf %9, %11 : vector<8x256xf32>
    %13 = math.exp %12 : vector<8x256xf32>
    %c0_8 = arith.constant 0 : index
    %c0_9 = arith.constant 0 : index
    %14 = vector.load %arg6[%c0_8, %c0_9] : memref<8x256xf32, #tpu.memory_space<vmem>>, vector<8x256xf32>
    tpu.vector_store %arg6[%c0_8, %c0_9], %13 {strides = array<i32>} : memref<8x256xf32, #tpu.memory_space<vmem>>, vector<8x256xf32>,
    return
  }
  func.func @transform_0(%arg0: i32, %arg1: i32) -> (i32, i32) {
    %c0_i32 = arith.constant 0 : i32
    %c0_i32_0 = arith.constant 0 : i32
    return %arg0, %c0_i32 : i32, i32
  }
  func.func @transform_1(%arg0: i32, %arg1: i32) -> (i32, i32) {
    %c0_i32 = arith.constant 0 : i32
    %c0_i32_0 = arith.constant 0 : i32
    return %c0_i32, %arg1 : i32, i32
  }
  func.func @transform_2(%arg0: i32, %arg1: i32) -> (i32, i32) {
    %c0_i32 = arith.constant 0 : i32
    %c0_i32_0 = arith.constant 0 : i32
    return %c0_i32, %arg1 : i32, i32
  }
  func.func @transform_3(%arg0: i32, %arg1: i32) -> (i32, i32) {
    %c0_i32 = arith.constant 0 : i32
    %c0_i32_0 = arith.constant 0 : i32
    return %arg0, %c0_i32 : i32, i32
  }
  func.func @transform_4(%arg0: i32, %arg1: i32) -> (i32, i32) {
    %c0_i32 = arith.constant 0 : i32
    return %arg0, %arg1 : i32, i32
  }
}

</mosaic_0001>

<llo_original>
// kernel: tpu_custom_call.1
$region0: #{tpu_custom_call.1}
  #allocation0 [shape = 'u32[]', space=smem, size = 0x4, offset = 0x4, fixed_abs, tag = 'smem constant byte address 0x4 - core index']
  #allocation1 [shape = 'u32[72,128]{1,0:T(1,128)}', space=vmem, size = 0x9000, scoped, tag = 'internal scratch']
  #allocation2 [shape = 'f32[8,16]{1,0:T(8,128)}', space=vmem, size = 0x1000, scoped, tag = 'scratch operand']
  %s0 = inlined_call_operand.hbm [shape: f32[8,16], index: 0, kind: input, shape index: {}]
  %s1 = inlined_call_operand.hbm [shape: f32[16,256], index: 1, kind: input, shape index: {}]
  %s2 = inlined_call_operand.hbm [shape: f32[1,256], index: 2, kind: input, shape index: {}]
  %s3 = inlined_call_operand.hbm [shape: f32[8,16], index: 3, kind: output, shape index: {0}]
  %s4 = inlined_call_operand.hbm [shape: f32[8,256], index: 4, kind: output, shape index: {1}]
  %5 = xla_tuple %s3, %s4
  %s6 = sld [smem:[#allocation0]]
  $region46: #{tpu_custom_call.1} parent=0
    _
  %s8 = ssub.s32 1, %s6
  %s9 = scalar_select 0, %s8, %s6
  $region1: #{tpu_custom_call.1} parent=0
    #allocation3 [shape = 'u8[4096]{0}', space=vmem, size = 0x1000, scoped, tag = 'input window, operand 0, single buffered']
    #allocation4 [shape = 's32[1]{0}', space=sflag, size = 0x4, scoped, tag = 'scoped memory for tpu_custom_call.1']
    #allocation5 [shape = 's32[1]{0}', space=sflag, size = 0x4, scoped, tag = 'scoped memory for tpu_custom_call.1']
    #allocation6 [shape = 'u8[16384]{0}', space=vmem, size = 0x4000, scoped, tag = 'input window, operand 1, single buffered']
    #allocation7 [shape = 's32[1]{0}', space=sflag, size = 0x4, scoped, tag = 'scoped memory for tpu_custom_call.1']
    #allocation8 [shape = 'u8[1024]{0}', space=vmem, size = 0x400, scoped, tag = 'input window, operand 2, single buffered']
    #allocation9 [shape = 'u8[4096]{0}', space=vmem, size = 0x1000, scoped, tag = 'output window, operand 0, single buffered']
    #allocation10 [shape = 'u8[8192]{0}', space=vmem, size = 0x2000, scoped, tag = 'output window, operand 1, single buffered']
    #allocation11 [shape = 's32[1]{0}', space=sflag, size = 0x4, scoped, tag = 'scoped memory for tpu_custom_call.1']
    %10 = vsyncpa [#allocation4], 0
    %11 = vsyncpa [#allocation7], 0
    %12 = vsyncpa [#allocation5], 0
    %13 = vsyncpa [#allocation11], 0
    // Predicated region
    $region2: #{tpu_custom_call.1} parent=1 // pred_check
      _
    $region3: #{tpu_custom_call.1} parent=1 // pred_check_branch
      %15 = sbr.rel (0) target = $region5
    $region4: #{tpu_custom_call.1} parent=1 // pred_region
      %17 = vsyncadd [#allocation4], 0
      %s19 = sshll.u32 %s0, 4
      %s20 = int_to_ptr.hbm [resolvable:$true] %s19
      %s21 = sshll.u32 [#allocation3], 4
      %s22 = int_to_ptr.vmem [resolvable:$true] %s21
      %24 = dma.hbm_to_vmem [thread:$0]  %s20, 128, %s22, [#allocation4]
    $region5: #{tpu_custom_call.1} parent=1 // pred_fallthru
      _
    // Predicated region
    $region6: #{tpu_custom_call.1} parent=1 // pred_check
      _
    $region7: #{tpu_custom_call.1} parent=1 // pred_check_branch
      %26 = sbr.rel (0) target = $region9
    $region8: #{tpu_custom_call.1} parent=1 // pred_region
      %28 = vsyncadd [#allocation7], 0
      %s29 = sshll.u32 %s1, 4
      %s30 = int_to_ptr.hbm [resolvable:$true] %s29
      %s31 = sshll.u32 [#allocation6], 4
      %s32 = int_to_ptr.vmem [resolvable:$true] %s31
      %37 = dma.hbm_to_vmem [thread:$0]  %s30, 512, %s32, [#allocation7], 256, 256, 16
    $region9: #{tpu_custom_call.1} parent=1 // pred_fallthru
      _
    // Predicated region
    $region10: #{tpu_custom_call.1} parent=1 // pred_check
      _
    $region11: #{tpu_custom_call.1} parent=1 // pred_check_branch
      %39 = sbr.rel (0) target = $region13
    $region12: #{tpu_custom_call.1} parent=1 // pred_region
      %41 = vsyncadd [#allocation7], 0
      %s43 = sshll.u32 %s2, 4
      %s44 = int_to_ptr.hbm [resolvable:$true] %s43
      %s45 = sshll.u32 [#allocation8], 4
      %s46 = int_to_ptr.vmem [resolvable:$true] %s45
      %48 = dma.hbm_to_vmem [thread:$0]  %s44, 32, %s46, [#allocation7]
    $region13: #{tpu_custom_call.1} parent=1 // pred_fallthru
      _
    // Predicated region
    $region14: #{tpu_custom_call.1} parent=1 // pred_check
      _
    $region15: #{tpu_custom_call.1} parent=1 // pred_check_branch
      %50 = sbr.rel (0) target = $region17
    $region16: #{tpu_custom_call.1} parent=1 // pred_region
      %52 = dma.done [#allocation4], 128
    $region17: #{tpu_custom_call.1} parent=1 // pred_fallthru
      _
    // Predicated region
    $region18: #{tpu_custom_call.1} parent=1 // pred_check
      _
    $region19: #{tpu_custom_call.1} parent=1 // pred_check_branch
      %54 = sbr.rel (0) target = $region21
    $region20: #{tpu_custom_call.1} parent=1 // pred_region
      %56 = dma.done [#allocation7], 512
    $region21: #{tpu_custom_call.1} parent=1 // pred_fallthru
      _
    // Predicated region
    $region22: #{tpu_custom_call.1} parent=1 // pred_check
      _
    $region23: #{tpu_custom_call.1} parent=1 // pred_check_branch
      %58 = sbr.rel (0) target = $region25
    $region24: #{tpu_custom_call.1} parent=1 // pred_region
      %60 = dma.done [#allocation7], 32
    $region25: #{tpu_custom_call.1} parent=1 // pred_fallthru
      _
    %p61 = scmp.eq.s32.totalorder 0, 0
    // Predicated region
    $region26: #{tpu_custom_call.1} parent=1 // pred_check
      %p62 = pneg %p61
    $region27: #{tpu_custom_call.1} parent=1 // pred_check_branch
      %64 = sbr.rel (%p62) target = $region29
    $region28: #{tpu_custom_call.1} parent=1 // pred_region
      %v65 = vld [vmem:[#allocation3] sm:$0xff]
      %vm66 = vcmask 130048
      %v67 = vsel %vm66, %v65, -inf
      %68 = vmax.xlane.f32.xlu0 %v67
      %v69 = vpop.xlane.xlu0 %68
      %v70 = vsub.f32 %v65, %v69
      %v71 = vmul.f32 %v70, 1.442695
      %v72 = vpow.pop %v71
      %v73 = vsel %vm66, %v72, 0.0
      %74 = vadd.xlane.f32.xlu0 %v73
      %v75 = vpop.xlane.xlu0 %74
      %v76 = vrcp.pop %v75
      %v77 = vmul.f32 %v75, %v76
      %v78 = vsub.f32 1.0, %v77
      %v79 = vmul.f32 %v76, %v78
      %v80 = vadd.f32 %v76, %v79
      %vm81 = vweird.f32 %v75
      %vm82 = vweird.f32 %v76
      %vm83 = vmor %vm81, %vm82
      %v84 = vsel %vm83, %v76, %v80
      %v85 = vand.u32 2147483647, %v75
      %vm86 = vcmp.eq.f32.partialorder %v85, 8.507059e+37
      %v87 = vand.u32 %v75, 2147483648
      %v88 = vor.u32 1.1754944e-38, %v87
      %v89 = vsel %vm86, %v88, %v84
      %v90 = vmul.f32 %v72, %v89
      %91 = vst.msk [vmem:[#allocation2] sm:$0xff] %vm66, %v90
      %92 = vst.msk [vmem:[#allocation9] sm:$0xff] %vm66, %v90
    $region29: #{tpu_custom_call.1} parent=1 // pred_fallthru
      _
    %v93 = vld [vmem:[#allocation2] sm:$0xff]
    %v94 = vld [vmem:[#allocation6] sm:$0xff]
    %v95 = vld [vmem:[#allocation6 + $0x8] sm:$0xff]
    %v96 = vld [vmem:[#allocation6 + $0x10] sm:$0xff]
    %v97 = vld [vmem:[#allocation6 + $0x18] sm:$0xff]
    %vm98 = vcmask 130048
    %v100 = vsel %vm98, %v93, 0
    %102 = vmatpush.msra.mxu0 0.0
    %103 = vmatpush.msra.mxu0 0.0
    %104 = vmatpush.msra.mxu0 0.0
    %105 = vmatpush.msra.mxu0 0.0
    %106 = vmatpush.msra.mxu0 0.0
    %107 = vmatpush.msra.mxu0 0.0
    %108 = vmatpush.msra.mxu0 0.0
    %109 = vmatpush.msra.mxu0 0.0
    %110 = vmatpush.msra.mxu0 0.0
    %111 = vmatpush.msra.mxu0 0.0
    %112 = vmatpush.msra.mxu0 0.0
    %113 = vmatpush.msra.mxu0 0.0
    %114 = vmatpush.msra.mxu0 0.0
    %115 = vmatpush.msra.mxu0 0.0
    %116 = vmatpush.msra.mxu0 %v96
    %117 = vmatpush.msra.mxu0 %v94
    %118 = vmatmul.f32.gmra.mxu0 %v100
    %v119 = vpop.f32.mrf.mxu0
    %v120 = vadd.f32 0.0, %v119
    %121 = vdwg.mxu0
    %122 = vmatpush.msra.mxu0 0.0
    %123 = vmatpush.msra.mxu0 0.0
    %124 = vmatpush.msra.mxu0 0.0
    %125 = vmatpush.msra.mxu0 0.0
    %126 = vmatpush.msra.mxu0 0.0
    %127 = vmatpush.msra.mxu0 0.0
    %128 = vmatpush.msra.mxu0 0.0
    %129 = vmatpush.msra.mxu0 0.0
    %130 = vmatpush.msra.mxu0 0.0
    %131 = vmatpush.msra.mxu0 0.0
    %132 = vmatpush.msra.mxu0 0.0
    %133 = vmatpush.msra.mxu0 0.0
    %134 = vmatpush.msra.mxu0 0.0
    %135 = vmatpush.msra.mxu0 0.0
    %136 = vmatpush.msra.mxu0 %v97
    %137 = vmatpush.msra.mxu0 %v95
    %138 = vmatmul.f32.gmra.mxu0 %v100
    %v139 = vpop.f32.mrf.mxu0
    %v140 = vadd.f32 0.0, %v139
    %141 = vdwg.mxu0
    %v142 = vmax.f32 %v120, -10.0
    %v143 = vmax.f32 %v140, -10.0
    %v144 = vmin.f32 %v142, 10.0
    %v145 = vmin.f32 %v143, 10.0
    %v146 = vld [vmem:[#allocation8] sm:$0x3]
    %v148 = vperm.slane %v146, 0
    %v149 = vperm.slane %v146, 1
    %v152 = vadd.f32 %v144, %v148
    %v153 = vadd.f32 %v145, %v149
    %v154 = vmul.f32 %v152, 1.442695
    %v155 = vpow.pop %v154
    %v156 = vmul.f32 %v153, 1.442695
    %v157 = vpow.pop %v156
    %158 = vst [vmem:[#allocation10] sm:$0xff] %v155
    %159 = vst [vmem:[#allocation10 + $0x8] sm:$0xff] %v157
    // Predicated region
    $region30: #{tpu_custom_call.1} parent=1 // pred_check
      _
    $region31: #{tpu_custom_call.1} parent=1 // pred_check_branch
      %161 = sbr.rel (0) target = $region33
    $region32: #{tpu_custom_call.1} parent=1 // pred_region
      %163 = vsyncadd [#allocation5], 0
      %s165 = sshll.u32 [#allocation9], 4
      %s166 = int_to_ptr.vmem [resolvable:$true] %s165
      %s167 = sshll.u32 %s3, 4
      %s168 = int_to_ptr.hbm [resolvable:$true] %s167
      %170 = dma.vmem_to_hbm [thread:$0]  %s166, 128, %s168, [#allocation5]
    $region33: #{tpu_custom_call.1} parent=1 // pred_fallthru
      _
    // Predicated region
    $region34: #{tpu_custom_call.1} parent=1 // pred_check
      _
    $region35: #{tpu_custom_call.1} parent=1 // pred_check_branch
      %172 = sbr.rel (0) target = $region37
    $region36: #{tpu_custom_call.1} parent=1 // pred_region
      %174 = vsyncadd [#allocation11], 0
      %s176 = sshll.u32 [#allocation10], 4
      %s177 = int_to_ptr.vmem [resolvable:$true] %s176
      %s178 = sshll.u32 %s4, 4
      %s179 = int_to_ptr.hbm [resolvable:$true] %s178
      %181 = dma.vmem_to_hbm [thread:$0]  %s177, 256, %s179, [#allocation11]
    $region37: #{tpu_custom_call.1} parent=1 // pred_fallthru
      _
    // Predicated region
    $region38: #{tpu_custom_call.1} parent=1 // pred_check
      _
    $region39: #{tpu_custom_call.1} parent=1 // pred_check_branch
      %183 = sbr.rel (0) target = $region41
    $region40: #{tpu_custom_call.1} parent=1 // pred_region
      %185 = dma.done [#allocation5], 128
    $region41: #{tpu_custom_call.1} parent=1 // pred_fallthru
      _
    // Predicated region
    $region42: #{tpu_custom_call.1} parent=1 // pred_check
      _
    $region43: #{tpu_custom_call.1} parent=1 // pred_check_branch
      %187 = sbr.rel (0) target = $region45
    $region44: #{tpu_custom_call.1} parent=1 // pred_region
      %189 = dma.done [#allocation11], 256
    $region45: #{tpu_custom_call.1} parent=1 // pred_fallthru
      _
    %190 = vsyncpa [#allocation4], 1
    %191 = vsyncpa [#allocation7], 1
    %192 = vsyncpa [#allocation5], 1
    %193 = vsyncpa [#allocation11], 1

</llo_original>
